<compile_context>
chip_gen: v5e
topology: v5e:2x2
jax: 0.10.0
libtpu: 0.0.40
codegen_flags: <defaults>
</compile_context>

<pallas_src>
import functools

import jax
import jax.numpy as jnp
import numpy as np
from jax import lax
from jax.experimental import pallas as pl
from jax.experimental.pallas import tpu as pltpu


def _cnn_block_kernel(x_ref, w_ref, b_ref, m_ref, out_ref, col_ref, *, H, W):
    """One image per grid step, channels-on-sublane / pixels-on-lane layout.

    x_ref   : (1, Cin, H*W)      input image, flattened spatial on lanes
    w_ref   : (Cout, 9*Cin)      3x3 conv weights, tap-major, BN scale folded in
    b_ref   : (Cout, 1)          folded BN bias
    m_ref   : (9, H*W)           per-tap halo validity masks (0/1 f32)
    out_ref : (1, Cout, H*W)
    col_ref : (9*Cin, H*W) VMEM  im2col scratch (fully overwritten every step)
    """
    HW = H * W
    Cin = x_ref.shape[1]

    x = x_ref[0]                                        # (Cin, HW), lane-dense

    # Build the im2col matrix: each 3x3 tap is a lane rotation of the flattened
    # image (rides the XLU slot) masked at the 1-pixel halo. Every row of
    # col_ref is written each step, so no zero-init is needed.
    for k in range(9):
        dy, dx = k // 3 - 1, k % 3 - 1
        off = dy * W + dx                               # flattened pixel offset
        if off == 0:
            shifted = x
        else:
            # shifted[p] == x[p + off]  (out-of-image positions masked below)
            shifted = pltpu.roll(x, shift=(-off) % HW, axis=1)
        col_ref[k * Cin:(k + 1) * Cin, :] = shifted * m_ref[k:k + 1, :]

    # Single fused K = 9*Cin matmul on the MXU (BN scale already in w_ref).
    acc = jnp.dot(w_ref[...], col_ref[...],
                  preferred_element_type=jnp.float32)   # (Cout, HW)
    y = acc + b_ref[...]                                # folded BN bias
    out_ref[0] = (y * jax.nn.sigmoid(y)).astype(out_ref.dtype)   # SiLU


def cnn_block_forward(x_nchw, w_hwio, gamma, beta, mean, var, eps=1e-5):
    """CNNBlock forward (eval mode). x_nchw: (N, Cin, H, W) f32 -> (N, Cout, H, W)."""
    N, Cin, H, W = x_nchw.shape
    kh, kw, wcin, Cout = w_hwio.shape
    assert (kh, kw) == (3, 3) and wcin == Cin, "only 3x3, groups=1 supported"
    HW = H * W

    # --- fold BatchNorm (eval) into the conv weight + a per-channel bias ------
    scale = gamma / jnp.sqrt(var + eps)                         # (Cout,)
    bias = beta - mean * scale                                  # (Cout,)
    # (3,3,Cin,Cout) -> (Cout,3,3,Cin) -> (Cout, 9*Cin): tap-major, matching
    # the im2col row order (k = dy*3+dx, then channel).
    w_mat = jnp.transpose(w_hwio, (3, 0, 1, 2)).reshape(Cout, 9 * Cin)
    w_mat = (w_mat * scale[:, None]).astype(jnp.float32)
    bias_col = bias[:, None].astype(jnp.float32)                # (Cout, 1)

    # --- halo validity masks for the 9 taps (shape-only constants) ------------
    yy, xx = np.meshgrid(np.arange(H), np.arange(W), indexing="ij")
    masks = np.zeros((9, HW), np.float32)
    for k in range(9):
        dy, dx = k // 3 - 1, k % 3 - 1
        valid = ((yy + dy >= 0) & (yy + dy < H) &
                 (xx + dx >= 0) & (xx + dx < W))
        masks[k] = valid.reshape(-1).astype(np.float32)
    masks = jnp.asarray(masks)

    # --- lane-dense layout at the pallas_call boundary -------------------------
    x_flat = x_nchw.reshape(N, Cin, HW)

    kernel = functools.partial(_cnn_block_kernel, H=H, W=W)
    out = pl.pallas_call(
        kernel,
        out_shape=jax.ShapeDtypeStruct((N, Cout, HW), jnp.float32),
        grid=(N,),
        in_specs=[
            pl.BlockSpec((1, Cin, HW), lambda n: (n, 0, 0)),
            pl.BlockSpec((Cout, 9 * Cin), lambda n: (0, 0)),
            pl.BlockSpec((Cout, 1), lambda n: (0, 0)),
            pl.BlockSpec((9, HW), lambda n: (0, 0)),
        ],
        out_specs=pl.BlockSpec((1, Cout, HW), lambda n: (n, 0, 0)),
        scratch_shapes=[pltpu.VMEM((9 * Cin, HW), jnp.float32)],
        compiler_params=pltpu.CompilerParams(
            dimension_semantics=("parallel",)),
    )(x_flat, w_mat, bias_col, masks)

    return out.reshape(N, Cout, H, W)


def reference_forward(x_nchw, w_hwio, gamma, beta, mean, var, eps=1e-5):
    """Pure-JAX reference mirroring the PyTorch eval forward (NCHW)."""
    y = lax.conv_general_dilated(
        x_nchw, w_hwio, (1, 1), ((1, 1), (1, 1)),
        dimension_numbers=("NCHW", "HWIO", "NCHW"),
        precision=lax.Precision.HIGHEST)
    scale = gamma / jnp.sqrt(var + eps)
    bias = beta - mean * scale
    y = y * scale[None, :, None, None] + bias[None, :, None, None]
    return y * jax.nn.sigmoid(y)


if __name__ == "__main__":
    # CNNBlock(in_channels=4, out_channels=16, kernel_size=3, stride=1,
    #          padding=1, groups=1); input NCHW [2, 4, 16, 16].
    N, Cin, H, W = 2, 4, 16, 16
    Cout = 16

    key = jax.random.PRNGKey(0)
    kx, kw, k1, k2, k3, k4 = jax.random.split(key, 6)

    x = jax.random.normal(kx, (N, Cin, H, W), jnp.float32)
    w_hwio = 0.2 * jax.random.normal(kw, (3, 3, Cin, Cout), jnp.float32)
    gamma = 1.0 + 0.1 * jax.random.normal(k1, (Cout,), jnp.float32)
    beta = 0.1 * jax.random.normal(k2, (Cout,), jnp.float32)
    mean = 0.1 * jax.random.normal(k3, (Cout,), jnp.float32)
    var = jax.random.uniform(k4, (Cout,), jnp.float32, 0.5, 1.5)

    out = cnn_block_forward(x, w_hwio, gamma, beta, mean, var)
    out = jax.block_until_ready(out)

    ref = jax.block_until_ready(
        reference_forward(x, w_hwio, gamma, beta, mean, var))
    np.testing.assert_allclose(np.asarray(out), np.asarray(ref),
                               rtol=2e-3, atol=2e-3)
    print("KERNEL_OK")
</pallas_src>

<mosaic_0001>
module attributes {stable_mosaic.version = 11 : i64} {
  func.func @_cnn_block_kernel(%arg0: i32, %arg1: memref<1x4x256xf32, #tpu.memory_space<vmem>>, %arg2: memref<16x36xf32, #tpu.memory_space<vmem>>, %arg3: memref<16x1xf32, #tpu.memory_space<vmem>>, %arg4: memref<9x256xf32, #tpu.memory_space<vmem>>, %arg5: memref<1x16x256xf32, #tpu.memory_space<vmem>>, %arg6: memref<36x256xf32, #tpu.memory_space<vmem>>) attributes {dimension_semantics = [#tpu.dimension_semantics<parallel>], iteration_bounds = array<i64: 2>, scalar_prefetch = 0 : i64, scratch_operands = 1 : i64, tpu.core_type = #tpu.core_type<tc>, window_params = [{transform_indices = @transform_0, window_bounds = array<i64: 1, 4, 256>}, {pipeline_mode = #tpu.pipeline_mode<synchronous>, transform_indices = @transform_1, window_bounds = array<i64: 16, 36>}, {pipeline_mode = #tpu.pipeline_mode<synchronous>, transform_indices = @transform_2, window_bounds = array<i64: 16, 1>}, {pipeline_mode = #tpu.pipeline_mode<synchronous>, transform_indices = @transform_3, window_bounds = array<i64: 9, 256>}, {transform_indices = @transform_4, window_bounds = array<i64: 1, 16, 256>}]} {
    %c0 = arith.constant 0 : index
    %c0_0 = arith.constant 0 : index
    %c0_1 = arith.constant 0 : index
    %0 = vector.load %arg1[%c0, %c0_0, %c0_1] : memref<1x4x256xf32, #tpu.memory_space<vmem>>, vector<1x4x256xf32>
    %1 = vector.shape_cast %0 : vector<1x4x256xf32> to vector<4x256xf32>
    %c17_i32 = arith.constant 17 : i32
    %2 = tpu.dynamic_rotate %1 by %c17_i32 dim 1 : vector<4x256xf32>, i32 -> vector<4x256xf32>
    %c0_2 = arith.constant 0 : index
    %c0_3 = arith.constant 0 : index
    %3 = vector.load %arg4[%c0_2, %c0_3] : memref<9x256xf32, #tpu.memory_space<vmem>>, vector<1x256xf32>
    %4 = vector.broadcast %3 : vector<1x256xf32> to vector<4x256xf32>
    %5 = arith.mulf %2, %4 : vector<4x256xf32>
    %c0_4 = arith.constant 0 : index
    %c0_5 = arith.constant 0 : index
    %6 = vector.load %arg6[%c0_4, %c0_5] : memref<36x256xf32, #tpu.memory_space<vmem>>, vector<4x256xf32>
    tpu.vector_store %arg6[%c0_4, %c0_5], %5 {strides = array<i32>} : memref<36x256xf32, #tpu.memory_space<vmem>>, vector<4x256xf32>,
    %c16_i32 = arith.constant 16 : i32
    %7 = tpu.dynamic_rotate %1 by %c16_i32 dim 1 : vector<4x256xf32>, i32 -> vector<4x256xf32>
    %c1 = arith.constant 1 : index
    %c0_6 = arith.constant 0 : index
    %8 = vector.load %arg4[%c1, %c0_6] : memref<9x256xf32, #tpu.memory_space<vmem>>, vector<1x256xf32>
    %9 = vector.broadcast %8 : vector<1x256xf32> to vector<4x256xf32>
    %10 = arith.mulf %7, %9 : vector<4x256xf32>
    %c4 = arith.constant 4 : index
    %c0_7 = arith.constant 0 : index
    %11 = vector.load %arg6[%c4, %c0_7] : memref<36x256xf32, #tpu.memory_space<vmem>>, vector<4x256xf32>
    tpu.vector_store %arg6[%c4, %c0_7], %10 {strides = array<i32>} : memref<36x256xf32, #tpu.memory_space<vmem>>, vector<4x256xf32>,
    %c15_i32 = arith.constant 15 : i32
    %12 = tpu.dynamic_rotate %1 by %c15_i32 dim 1 : vector<4x256xf32>, i32 -> vector<4x256xf32>
    %c2 = arith.constant 2 : index
    %c0_8 = arith.constant 0 : index
    %13 = vector.load %arg4[%c2, %c0_8] : memref<9x256xf32, #tpu.memory_space<vmem>>, vector<1x256xf32>
    %14 = vector.broadcast %13 : vector<1x256xf32> to vector<4x256xf32>
    %15 = arith.mulf %12, %14 : vector<4x256xf32>
    %c8 = arith.constant 8 : index
    %c0_9 = arith.constant 0 : index
    %16 = vector.load %arg6[%c8, %c0_9] : memref<36x256xf32, #tpu.memory_space<vmem>>, vector<4x256xf32>
    tpu.vector_store %arg6[%c8, %c0_9], %15 {strides = array<i32>} : memref<36x256xf32, #tpu.memory_space<vmem>>, vector<4x256xf32>,
    %c1_i32 = arith.constant 1 : i32
    %17 = tpu.dynamic_rotate %1 by %c1_i32 dim 1 : vector<4x256xf32>, i32 -> vector<4x256xf32>
    %c3 = arith.constant 3 : index
    %c0_10 = arith.constant 0 : index
    %18 = vector.load %arg4[%c3, %c0_10] : memref<9x256xf32, #tpu.memory_space<vmem>>, vector<1x256xf32>
    %19 = vector.broadcast %18 : vector<1x256xf32> to vector<4x256xf32>
    %20 = arith.mulf %17, %19 : vector<4x256xf32>
    %c12 = arith.constant 12 : index
    %c0_11 = arith.constant 0 : index
    %21 = vector.load %arg6[%c12, %c0_11] : memref<36x256xf32, #tpu.memory_space<vmem>>, vector<4x256xf32>
    tpu.vector_store %arg6[%c12, %c0_11], %20 {strides = array<i32>} : memref<36x256xf32, #tpu.memory_space<vmem>>, vector<4x256xf32>,
    %c4_12 = arith.constant 4 : index
    %c0_13 = arith.constant 0 : index
    %22 = vector.load %arg4[%c4_12, %c0_13] : memref<9x256xf32, #tpu.memory_space<vmem>>, vector<1x256xf32>
    %23 = vector.broadcast %22 : vector<1x256xf32> to vector<4x256xf32>
    %24 = arith.mulf %1, %23 : vector<4x256xf32>
    %c16 = arith.constant 16 : index
    %c0_14 = arith.constant 0 : index
    %25 = vector.load %arg6[%c16, %c0_14] : memref<36x256xf32, #tpu.memory_space<vmem>>, vector<4x256xf32>
    tpu.vector_store %arg6[%c16, %c0_14], %24 {strides = array<i32>} : memref<36x256xf32, #tpu.memory_space<vmem>>, vector<4x256xf32>,
    %c255_i32 = arith.constant 255 : i32
    %26 = tpu.dynamic_rotate %1 by %c255_i32 dim 1 : vector<4x256xf32>, i32 -> vector<4x256xf32>
    %c5 = arith.constant 5 : index
    %c0_15 = arith.constant 0 : index
    %27 = vector.load %arg4[%c5, %c0_15] : memref<9x256xf32, #tpu.memory_space<vmem>>, vector<1x256xf32>
    %28 = vector.broadcast %27 : vector<1x256xf32> to vector<4x256xf32>
    %29 = arith.mulf %26, %28 : vector<4x256xf32>
    %c20 = arith.constant 20 : index
    %c0_16 = arith.constant 0 : index
    %30 = vector.load %arg6[%c20, %c0_16] : memref<36x256xf32, #tpu.memory_space<vmem>>, vector<4x256xf32>
    tpu.vector_store %arg6[%c20, %c0_16], %29 {strides = array<i32>} : memref<36x256xf32, #tpu.memory_space<vmem>>, vector<4x256xf32>,
    %c241_i32 = arith.constant 241 : i32
    %31 = tpu.dynamic_rotate %1 by %c241_i32 dim 1 : vector<4x256xf32>, i32 -> vector<4x256xf32>
    %c6 = arith.constant 6 : index
    %c0_17 = arith.constant 0 : index
    %32 = vector.load %arg4[%c6, %c0_17] : memref<9x256xf32, #tpu.memory_space<vmem>>, vector<1x256xf32>
    %33 = vector.broadcast %32 : vector<1x256xf32> to vector<4x256xf32>
    %34 = arith.mulf %31, %33 : vector<4x256xf32>
    %c24 = arith.constant 24 : index
    %c0_18 = arith.constant 0 : index
    %35 = vector.load %arg6[%c24, %c0_18] : memref<36x256xf32, #tpu.memory_space<vmem>>, vector<4x256xf32>
    tpu.vector_store %arg6[%c24, %c0_18], %34 {strides = array<i32>} : memref<36x256xf32, #tpu.memory_space<vmem>>, vector<4x256xf32>,
    %c240_i32 = arith.constant 240 : i32
    %36 = tpu.dynamic_rotate %1 by %c240_i32 dim 1 : vector<4x256xf32>, i32 -> vector<4x256xf32>
    %c7 = arith.constant 7 : index
    %c0_19 = arith.constant 0 : index
    %37 = vector.load %arg4[%c7, %c0_19] : memref<9x256xf32, #tpu.memory_space<vmem>>, vector<1x256xf32>
    %38 = vector.broadcast %37 : vector<1x256xf32> to vector<4x256xf32>
    %39 = arith.mulf %36, %38 : vector<4x256xf32>
    %c28 = arith.constant 28 : index
    %c0_20 = arith.constant 0 : index
    %40 = vector.load %arg6[%c28, %c0_20] : memref<36x256xf32, #tpu.memory_space<vmem>>, vector<4x256xf32>
    tpu.vector_store %arg6[%c28, %c0_20], %39 {strides = array<i32>} : memref<36x256xf32, #tpu.memory_space<vmem>>, vector<4x256xf32>,
    %c239_i32 = arith.constant 239 : i32
    %41 = tpu.dynamic_rotate %1 by %c239_i32 dim 1 : vector<4x256xf32>, i32 -> vector<4x256xf32>
    %c8_21 = arith.constant 8 : index
    %c0_22 = arith.constant 0 : index
    %42 = vector.load %arg4[%c8_21, %c0_22] : memref<9x256xf32, #tpu.memory_space<vmem>>, vector<1x256xf32>
    %43 = vector.broadcast %42 : vector<1x256xf32> to vector<4x256xf32>
    %44 = arith.mulf %41, %43 : vector<4x256xf32>
    %c32 = arith.constant 32 : index
    %c0_23 = arith.constant 0 : index
    %45 = vector.load %arg6[%c32, %c0_23] : memref<36x256xf32, #tpu.memory_space<vmem>>, vector<4x256xf32>
    tpu.vector_store %arg6[%c32, %c0_23], %44 {strides = array<i32>} : memref<36x256xf32, #tpu.memory_space<vmem>>, vector<4x256xf32>,
    %c0_24 = arith.constant 0 : index
    %c0_25 = arith.constant 0 : index
    %46 = vector.load %arg2[%c0_24, %c0_25] : memref<16x36xf32, #tpu.memory_space<vmem>>, vector<16x36xf32>
    %c0_26 = arith.constant 0 : index
    %c0_27 = arith.constant 0 : index
    %47 = vector.load %arg6[%c0_26, %c0_27] : memref<36x256xf32, #tpu.memory_space<vmem>>, vector<36x256xf32>
    %cst = arith.constant dense<0.000000e+00> : vector<16x256xf32>
    %48 = tpu.matmul %46, %47, %cst {dimension_numbers = #tpu.dot_dimension_numbers<[1], [0], [0], [1], [0, 0, 1, 1], [], []>} : vector<16x36xf32>, vector<36x256xf32>, vector<16x256xf32> -> vector<16x256xf32>
    %c0_28 = arith.constant 0 : index
    %c0_29 = arith.constant 0 : index
    %49 = vector.load %arg3[%c0_28, %c0_29] : memref<16x1xf32, #tpu.memory_space<vmem>>, vector<16x1xf32>
    %50 = vector.broadcast %49 : vector<16x1xf32> to vector<16x256xf32>
    %51 = arith.addf %48, %50 : vector<16x256xf32>
    %52 = arith.negf %51 : vector<16x256xf32>
    %53 = math.exp %52 : vector<16x256xf32>
    %cst_30 = arith.constant 1.000000e+00 : f32
    %54 = vector.broadcast %cst_30 : f32 to vector<16x256xf32>
    %55 = arith.addf %54, %53 : vector<16x256xf32>
    %56 = arith.divf %54, %55 : vector<16x256xf32>
    %57 = arith.mulf %51, %56 : vector<16x256xf32>
    %c0_31 = arith.constant 0 : index
    %c0_32 = arith.constant 0 : index
    %c0_33 = arith.constant 0 : index
    %58 = vector.load %arg5[%c0_31, %c0_32, %c0_33] : memref<1x16x256xf32, #tpu.memory_space<vmem>>, vector<1x16x256xf32>
    %59 = vector.shape_cast %58 : vector<1x16x256xf32> to vector<16x256xf32>
    %60 = vector.shape_cast %57 : vector<16x256xf32> to vector<1x16x256xf32>
    tpu.vector_store %arg5[%c0_31, %c0_32, %c0_33], %60 {strides = array<i32>} : memref<1x16x256xf32, #tpu.memory_space<vmem>>, vector<1x16x256xf32>,
    return
  }
  func.func @transform_0(%arg0: i32) -> (i32, i32, i32) {
    %c0_i32 = arith.constant 0 : i32
    %c0_i32_0 = arith.constant 0 : i32
    %c0_i32_1 = arith.constant 0 : i32
    return %arg0, %c0_i32, %c0_i32_0 : i32, i32, i32
  }
  func.func @transform_1(%arg0: i32) -> (i32, i32) {
    %c0_i32 = arith.constant 0 : i32
    %c0_i32_0 = arith.constant 0 : i32
    %c0_i32_1 = arith.constant 0 : i32
    return %c0_i32, %c0_i32_0 : i32, i32
  }
  func.func @transform_2(%arg0: i32) -> (i32, i32) {
    %c0_i32 = arith.constant 0 : i32
    %c0_i32_0 = arith.constant 0 : i32
    %c0_i32_1 = arith.constant 0 : i32
    return %c0_i32, %c0_i32_0 : i32, i32
  }
  func.func @transform_3(%arg0: i32) -> (i32, i32) {
    %c0_i32 = arith.constant 0 : i32
    %c0_i32_0 = arith.constant 0 : i32
    %c0_i32_1 = arith.constant 0 : i32
    return %c0_i32, %c0_i32_0 : i32, i32
  }
  func.func @transform_4(%arg0: i32) -> (i32, i32, i32) {
    %c0_i32 = arith.constant 0 : i32
    %c0_i32_0 = arith.constant 0 : i32
    %c0_i32_1 = arith.constant 0 : i32
    return %arg0, %c0_i32, %c0_i32_0 : i32, i32, i32
  }
}

</mosaic_0001>

<llo_original>
// kernel: tpu_custom_call.1
$region0: #{tpu_custom_call.1}
  #allocation0 [shape = 'u32[]', space=smem, size = 0x4, offset = 0x4, fixed_abs, tag = 'smem constant byte address 0x4 - core index']
  #allocation1 [shape = 'u32[72,128]{1,0:T(1,128)}', space=vmem, size = 0x9000, scoped, tag = 'internal scratch']
  #allocation2 [shape = 'f32[36,256]{1,0:T(8,128)}', space=vmem, size = 0xa000, scoped, tag = 'scratch operand']
  %s0 = inlined_call_operand.vmem [shape: f32[2,4,256], index: 0, kind: input, shape index: {}]
  %s1 = inlined_call_operand.hbm [shape: f32[16,36], index: 1, kind: input, shape index: {}]
  %s2 = inlined_call_operand.vmem [shape: f32[16,1], index: 2, kind: input, shape index: {}]
  %s3 = inlined_call_operand.hbm [shape: f32[9,256], index: 3, kind: input, shape index: {}]
  %s4 = inlined_call_operand.hbm [shape: f32[2,16,256], index: 4, kind: output, shape index: {}]
  %s5 = sld [smem:[#allocation0]]
  $region57: #{tpu_custom_call.1} parent=0
    _
  %s7 = ssub.s32 1, %s5
  %s8 = scalar_select 0, %s7, %s5
  $region1: #{tpu_custom_call.1} parent=0
    #allocation3 [shape = 'u8[8192]{0}', space=vmem, size = 0x2000, scoped, tag = 'input window, operand 1, single buffered']
    #allocation4 [shape = 's32[2]{0}', space=sflag, size = 0x8, scoped, tag = 'scoped memory for tpu_custom_call.1']
    #allocation5 [shape = 's32[2]{0}', space=sflag, size = 0x8, scoped, tag = 'scoped memory for tpu_custom_call.1']
    #allocation6 [shape = 'u8[16384]{0}', space=vmem, size = 0x4000, scoped, tag = 'input window, operand 3, single buffered']
    #allocation7 [shape = 's32[1]{0}', space=sflag, size = 0x4, scoped, tag = 'scoped memory for tpu_custom_call.1']
    #allocation8 [shape = 'u8[32768]{0}', space=vmem, size = 0x8000, scoped, tag = 'output window, operand 0']
    %9 = vsyncpa [#allocation4], 0
    %10 = vsyncpa [#allocation7], 0
    %11 = vsyncpa [#allocation5], 0
    %s12 = scalar_lea.sflag [#allocation5], 1
    %13 = vsyncpa %s12, 0
    loop: start=0, step=1, limit=4
    $region2: #{tpu_custom_call.1} parent=1 // loop_pre_header
      _
    $region3: #{tpu_custom_call.1} parent=1 // loop_header
      %s15 = sphi 0, %s19
      %p16 = scmp.ge.s32.totalorder %s15, 4
      %s25 = sphi 0, %s27
      %s28 = sphi 0, %s25
      %s29 = sphi 0, %s28
      %s45 = sphi 0, %s29
      %s49 = sphi 0, %s49
      %s51 = sphi 0, %s49
      %s52 = sphi 0, %s51
      %s66 = sphi 0, %s52
      %s70 = sphi 0, %s70
      %s72 = sphi 0, %s70
      %s73 = sphi 0, %s72
      %s87 = sphi 0, %s73
      %s91 = sphi 0, %s91
      %s93 = sphi 0, %s91
      %s94 = sphi 0, %s93
      %s108 = sphi 0, %s94
      %s114 = sphi 0, %s116
      %s117 = sphi 0, %s114
      %s118 = sphi 0, %s117
      %s134 = sphi 0, %s118
    $region4: #{tpu_custom_call.1} parent=1 // loop_header_branch
      %18 = sbr.rel (%p16) target = $region8
    $region5: #{tpu_custom_call.1} parent=1 // loop_body
      %s20 = ssub.s32 %s15, 1
      %s21 = ssub.s32 %s15, 2
      %s22 = sadd.s32 %s15, 1
      %s23 = ssub.s32 %s15, %s22
      %p24 = scmp.eq.s32.totalorder %s23, 0
      %s26 = sadd.s32 %s25, 1
      %s27 = scalar_select %p24, %s25, %s26
      %p30 = pneg %p24
      %p31 = scmp.eq.s32.totalorder %s15, 1
      %p32 = por %p30, %p31
      %p33 = scmp.ne.s32.totalorder %s25, %s28
      %p34 = scmp.eq.s32.totalorder %s15, 0
      %p35 = por %p33, %p34
      %p36 = scmp.ne.s32.totalorder %s25, %s28
      %p37 = scmp.eq.s32.totalorder %s20, 1
      %p38 = por %p36, %p37
      %p39 = scmp.ne.s32.totalorder %s28, %s29
      %p40 = scmp.eq.s32.totalorder %s20, 0
      %p41 = por %p39, %p40
      %p42 = scmp.ne.s32.totalorder %s28, %s29
      %p43 = scmp.eq.s32.totalorder %s21, 1
      %p44 = por %p42, %p43
      %p46 = scmp.ne.s32.totalorder %s29, %s45
      %p47 = scmp.eq.s32.totalorder %s21, 0
      %p48 = por %p46, %p47
      %s50 = sadd.s32 %s49, 1
      %p53 = scmp.eq.s32.totalorder %s15, 1
      %p54 = scmp.ne.s32.totalorder %s49, %s51
      %p55 = scmp.eq.s32.totalorder %s15, 0
      %p56 = por %p54, %p55
      %p57 = scmp.ne.s32.totalorder %s49, %s51
      %p58 = scmp.eq.s32.totalorder %s20, 1
      %p59 = por %p57, %p58
      %p60 = scmp.ne.s32.totalorder %s51, %s52
      %p61 = scmp.eq.s32.totalorder %s20, 0
      %p62 = por %p60, %p61
      %p63 = scmp.ne.s32.totalorder %s51, %s52
      %p64 = scmp.eq.s32.totalorder %s21, 1
      %p65 = por %p63, %p64
      %p67 = scmp.ne.s32.totalorder %s52, %s66
      %p68 = scmp.eq.s32.totalorder %s21, 0
      %p69 = por %p67, %p68
      %s71 = sadd.s32 %s70, 1
      %p74 = scmp.eq.s32.totalorder %s15, 1
      %p75 = scmp.ne.s32.totalorder %s70, %s72
      %p76 = scmp.eq.s32.totalorder %s15, 0
      %p77 = por %p75, %p76
      %p78 = scmp.ne.s32.totalorder %s70, %s72
      %p79 = scmp.eq.s32.totalorder %s20, 1
      %p80 = por %p78, %p79
      %p81 = scmp.ne.s32.totalorder %s72, %s73
      %p82 = scmp.eq.s32.totalorder %s20, 0
      %p83 = por %p81, %p82
      %p84 = scmp.ne.s32.totalorder %s72, %s73
      %p85 = scmp.eq.s32.totalorder %s21, 1
      %p86 = por %p84, %p85
      %p88 = scmp.ne.s32.totalorder %s73, %s87
      %p89 = scmp.eq.s32.totalorder %s21, 0
      %p90 = por %p88, %p89
      %s92 = sadd.s32 %s91, 1
      %p95 = scmp.eq.s32.totalorder %s15, 1
      %p96 = scmp.ne.s32.totalorder %s91, %s93
      %p97 = scmp.eq.s32.totalorder %s15, 0
      %p98 = por %p96, %p97
      %p99 = scmp.ne.s32.totalorder %s91, %s93
      %p100 = scmp.eq.s32.totalorder %s20, 1
      %p101 = por %p99, %p100
      %p102 = scmp.ne.s32.totalorder %s93, %s94
      %p103 = scmp.eq.s32.totalorder %s20, 0
      %p104 = por %p102, %p103
      %p105 = scmp.ne.s32.totalorder %s93, %s94
      %p106 = scmp.eq.s32.totalorder %s21, 1
      %p107 = por %p105, %p106
      %p109 = scmp.ne.s32.totalorder %s94, %s108
      %p110 = scmp.eq.s32.totalorder %s21, 0
      %p111 = por %p109, %p110
      %s112 = ssub.s32 %s15, %s22
      %p113 = scmp.eq.s32.totalorder %s112, 0
      %s115 = sadd.s32 %s114, 1
      %s116 = scalar_select %p113, %s114, %s115
      %p119 = pneg %p113
      %p120 = scmp.eq.s32.totalorder %s15, 1
      %p121 = por %p119, %p120
      %p122 = scmp.ne.s32.totalorder %s114, %s117
      %p123 = scmp.eq.s32.totalorder %s15, 0
      %p124 = por %p122, %p123
      %p125 = scmp.ne.s32.totalorder %s114, %s117
      %p126 = scmp.eq.s32.totalorder %s20, 1
      %p127 = por %p125, %p126
      %p128 = scmp.ne.s32.totalorder %s117, %s118
      %p129 = scmp.eq.s32.totalorder %s20, 0
      %p130 = por %p128, %p129
      %p131 = scmp.ne.s32.totalorder %s117, %s118
      %p132 = scmp.eq.s32.totalorder %s21, 1
      %p133 = por %p131, %p132
      %p135 = scmp.ne.s32.totalorder %s118, %s134
      %p136 = scmp.eq.s32.totalorder %s21, 0
      %p137 = por %p135, %p136
      %p138 = scmp.le.s32.totalorder 1, %s15
      %p139 = scmp.lt.s32.totalorder %s15, 3
      %p140 = pnand %p138, %p139
      %p141 = pneg %p140
      // Predicated region
      $region9: #{tpu_custom_call.1} parent=5 // pred_check
        _
      $region10: #{tpu_custom_call.1} parent=5 // pred_check_branch
        %143 = sbr.rel (%p140) target = $region12
      $region11: #{tpu_custom_call.1} parent=5 // pred_region
        %s144 = ssub.s32 %s15, 1
        // Predicated region
        $region13: #{tpu_custom_call.1} parent=11 // pred_check
          %p145 = pneg %p62
        $region14: #{tpu_custom_call.1} parent=11 // pred_check_branch
          %147 = sbr.rel (%p145) target = $region16
        $region15: #{tpu_custom_call.1} parent=11 // pred_region
          %149 = vsyncadd [#allocation4], 0
          %s150 = sshll.u32 %s1, 4
          %s151 = int_to_ptr.hbm [resolvable:$true] %s150
          %s152 = sshll.u32 [#allocation3], 4
          %s153 = int_to_ptr.vmem [resolvable:$true] %s152
          %158 = dma.hbm_to_vmem [thread:$0]  %s151, 256, %s153, [#allocation4], 128, 128, 8
        $region16: #{tpu_custom_call.1} parent=11 // pred_fallthru
          _
        // Predicated region
        $region17: #{tpu_custom_call.1} parent=11 // pred_check
          %p159 = pneg %p83
        $region18: #{tpu_custom_call.1} parent=11 // pred_check_branch
          %161 = sbr.rel (%p159) target = $region20
        $region19: #{tpu_custom_call.1} parent=11 // pred_region
          _
        $region20: #{tpu_custom_call.1} parent=11 // pred_fallthru
          _
        // Predicated region
        $region21: #{tpu_custom_call.1} parent=11 // pred_check
          %p162 = pneg %p104
        $region22: #{tpu_custom_call.1} parent=11 // pred_check_branch
          %164 = sbr.rel (%p162) target = $region24
        $region23: #{tpu_custom_call.1} parent=11 // pred_region
          %166 = vsyncadd [#allocation7], 0
          %s167 = sshll.u32 %s3, 4
          %s168 = int_to_ptr.hbm [resolvable:$true] %s167
          %s169 = sshll.u32 [#allocation6], 4
          %s170 = int_to_ptr.vmem [resolvable:$true] %s169
          %175 = dma.hbm_to_vmem [thread:$0]  %s168, 512, %s170, [#allocation7], 256, 256, 16
        $region24: #{tpu_custom_call.1} parent=11 // pred_fallthru
          _
      $region12: #{tpu_custom_call.1} parent=5 // pred_fallthru
        _
      %p176 = scmp.lt.s32.totalorder %s15, 2
      // Predicated region
      $region25: #{tpu_custom_call.1} parent=5 // pred_check
        %p177 = pneg %p176
      $region26: #{tpu_custom_call.1} parent=5 // pred_check_branch
        %179 = sbr.rel (%p177) target = $region28
      $region27: #{tpu_custom_call.1} parent=5 // pred_region
        // Predicated region
        $region29: #{tpu_custom_call.1} parent=27 // pred_check
          %p180 = pneg %p35
        $region30: #{tpu_custom_call.1} parent=27 // pred_check_branch
          %182 = sbr.rel (%p180) target = $region32
        $region31: #{tpu_custom_call.1} parent=27 // pred_region
          %p183 = scmp.lt.s32.totalorder %s15, 1
          %s184 = scalar_select %p183, %s15, 1
          %s185 = smul.addr %s184, 2
          %s186 = smul.addr %s185, 4
          %s187 = scalar_lea.vmem %s0, %s186
        $region32: #{tpu_custom_call.1} parent=27 // pred_fallthru
          _
      $region28: #{tpu_custom_call.1} parent=5 // pred_fallthru
        _
      %p188 = scmp.le.s32.totalorder 1, %s15
      %p189 = scmp.lt.s32.totalorder %s15, 3
      %p190 = pnand %p188, %p189
      %p191 = pneg %p190
      // Predicated region
      $region33: #{tpu_custom_call.1} parent=5 // pred_check
        _
      $region34: #{tpu_custom_call.1} parent=5 // pred_check_branch
        %193 = sbr.rel (%p190) target = $region36
      $region35: #{tpu_custom_call.1} parent=5 // pred_region
        %s194 = ssub.s32 %s15, 1
        // Predicated region
        $region37: #{tpu_custom_call.1} parent=35 // pred_check
          %p195 = pneg %p62
        $region38: #{tpu_custom_call.1} parent=35 // pred_check_branch
          %197 = sbr.rel (%p195) target = $region40
        $region39: #{tpu_custom_call.1} parent=35 // pred_region
          %199 = dma.done [#allocation4], 256
        $region40: #{tpu_custom_call.1} parent=35 // pred_fallthru
          _
        // Predicated region
        $region41: #{tpu_custom_call.1} parent=35 // pred_check
          %p200 = pneg %p104
        $region42: #{tpu_custom_call.1} parent=35 // pred_check_branch
          %202 = sbr.rel (%p200) target = $region44
        $region43: #{tpu_custom_call.1} parent=35 // pred_region
          %204 = dma.done [#allocation7], 512
        $region44: #{tpu_custom_call.1} parent=35 // pred_fallthru
          _
        %p205 = scmp.lt.s32.totalorder %s20, 1
        %s206 = scalar_select %p205, %s20, 1
        %s207 = smul.addr %s206, 2
        %s208 = smul.addr %s207, 4
        %s209 = scalar_lea.vmem %s0, %s208
        %p210 = pneg %p41
        %p211 = pneg %p38
        %p212 = pneg %p62
        %p213 = pneg %p59
        %p214 = pneg %p83
        %p215 = pneg %p80
        %p216 = pneg %p104
        %p217 = pneg %p101
        %p218 = pneg %p130
        %p219 = pneg %p127
        %s220 = sand.u32 %s117, 1
        %s221 = scalar_lea.sflag [#allocation5], %s220
        %s222 = sand.u32 %s117, 1
        %s223 = smul.addr %s222, 32
        %s224 = scalar_lea.vmem [#allocation8], %s223
        %p225 = scmp.lt.s32.totalorder %s20, 1
        %s226 = scalar_select %p225, %s20, 1
        %s227 = smul.addr %s226, 2
        %s228 = smul.addr %s227, 4
        %s229 = scalar_lea.vmem %s0, %s228
        %v230 = vld [vmem:[%s229] sm:$0xff]
        %232 = vst [vmem:[#allocation1] ss:$2 sm:$0xff] %v230
        %v233 = vld.sshfl [vmem:[#allocation1] sm:$0xff pattern:$0x75316420]
        %v234 = vld.sshfl [vmem:[#allocation1 + $0x8] sm:$0xff pattern:$0x75316420]
        %237 = vrot.lane.b32.xlu0 %v233, 17
        %v238 = vpop.permute.xlu0 %237
        %239 = vrot.lane.b32.xlu0 %v234, 17
        %v240 = vpop.permute.xlu0 %239
        %v241 = vlaneseq
        %v242 = vand.u32 %v241, 127
        %vm243 = vcmp.lt.s32.totalorder %v242, 17
        %v244 = vsel %vm243, %v238, %v240
        %v245 = vsel %vm243, %v240, %v238
        %v246 = vld [vmem:[#allocation6] ss:$8 sm:$0x3]
        %v248 = vperm.slane %v246, 0
        %v249 = vperm.slane %v246, 1
        %v252 = vmul.f32 %v245, %v248
        %v253 = vmul.f32 %v244, %v249
        %254 = vst [vmem:[#allocation2] sm:$0xf] %v252
        %255 = vst [vmem:[#allocation2 + $0x8] sm:$0xf] %v253
        %256 = vst [vmem:[#allocation1] ss:$2 sm:$0xff] %v230
        %v257 = vld.sshfl [vmem:[#allocation1] sm:$0xff pattern:$0x75316420]
        %v258 = vld.sshfl [vmem:[#allocation1 + $0x8] sm:$0xff pattern:$0x75316420]
        %261 = vrot.lane.b32.xlu0 %v257, 16
        %v262 = vpop.permute.xlu0 %261
        %263 = vrot.lane.b32.xlu0 %v258, 16
        %v264 = vpop.permute.xlu0 %263
        %vm265 = vcmp.lt.s32.totalorder %v242, 16
        %v266 = vsel %vm265, %v262, %v264
        %v267 = vsel %vm265, %v264, %v262
        %s268 = scalar_lea.vmem [#allocation6], 1
        %v269 = vld [vmem:[%s268] ss:$8 sm:$0x3]
        %v271 = vperm.slane %v269, 0
        %v272 = vperm.slane %v269, 1
        %v275 = vmul.f32 %v267, %v271
        %v276 = vmul.f32 %v266, %v272
        %v279 = vrot.slane %v275, 4
        %v280 = vrot.slane %v276, 4
        %283 = vst [vmem:[#allocation2] sm:$0xf0] %v279
        %284 = vst [vmem:[#allocation2 + $0x8] sm:$0xf0] %v280
        %285 = vst [vmem:[#allocation1] ss:$2 sm:$0xff] %v230
        %v286 = vld.sshfl [vmem:[#allocation1] sm:$0xff pattern:$0x75316420]
        %v287 = vld.sshfl [vmem:[#allocation1 + $0x8] sm:$0xff pattern:$0x75316420]
        %290 = vrot.lane.b32.xlu0 %v286, 15
        %v291 = vpop.permute.xlu0 %290
        %292 = vrot.lane.b32.xlu0 %v287, 15
        %v293 = vpop.permute.xlu0 %292
        %vm294 = vcmp.lt.s32.totalorder %v242, 15
        %v295 = vsel %vm294, %v291, %v293
        %v296 = vsel %vm294, %v293, %v291
        %s297 = scalar_lea.vmem [#allocation6], 2
        %v298 = vld [vmem:[%s297] ss:$8 sm:$0x3]
        %v300 = vperm.slane %v298, 0
        %v301 = vperm.slane %v298, 1
        %v304 = vmul.f32 %v296, %v300
        %v305 = vmul.f32 %v295, %v301
        %306 = vst [vmem:[#allocation2 + $0x10] sm:$0xf] %v304
        %307 = vst [vmem:[#allocation2 + $0x18] sm:$0xf] %v305
        %308 = vst [vmem:[#allocation1] ss:$2 sm:$0xff] %v230
        %v309 = vld.sshfl [vmem:[#allocation1] sm:$0xff pattern:$0x75316420]
        %v310 = vld.sshfl [vmem:[#allocation1 + $0x8] sm:$0xff pattern:$0x75316420]
        %313 = vrot.lane.b32.xlu0 %v309, 1
        %v314 = vpop.permute.xlu0 %313
        %315 = vrot.lane.b32.xlu0 %v310, 1
        %v316 = vpop.permute.xlu0 %315
        %vm317 = vcmp.lt.s32.totalorder %v242, 1
        %v318 = vsel %vm317, %v314, %v316
        %v319 = vsel %vm317, %v316, %v314
        %s320 = scalar_lea.vmem [#allocation6], 3
        %v321 = vld [vmem:[%s320] ss:$8 sm:$0x3]
        %v323 = vperm.slane %v321, 0
        %v324 = vperm.slane %v321, 1
        %v327 = vmul.f32 %v319, %v323
        %v328 = vmul.f32 %v318, %v324
        %v331 = vrot.slane %v327, 4
        %v332 = vrot.slane %v328, 4
        %335 = vst [vmem:[#allocation2 + $0x10] sm:$0xf0] %v331
        %336 = vst [vmem:[#allocation2 + $0x18] sm:$0xf0] %v332
        %s337 = scalar_lea.vmem [#allocation6], 4
        %v338 = vld [vmem:[%s337] ss:$8 sm:$0x3]
        %v340 = vperm.slane %v338, 0
        %v341 = vperm.slane %v338, 1
        %v342 = vrot.slane %v341, 4
        %vm343 = vcmask 1043456
        %v344 = vsel %vm343, %v340, %v342
        %v346 = vmul.f32 %v230, %v344
        %348 = vst [vmem:[#allocation1] ss:$2 sm:$0xff] %v346
        %v349 = vld.sshfl [vmem:[#allocation1] sm:$0xff pattern:$0x75316420]
        %v350 = vld.sshfl [vmem:[#allocation1 + $0x8] sm:$0xff pattern:$0x75316420]
        %353 = vst [vmem:[#allocation2 + $0x20] sm:$0xf] %v349
        %354 = vst [vmem:[#allocation2 + $0x28] sm:$0xf] %v350
        %355 = vst [vmem:[#allocation1] ss:$2 sm:$0xff] %v230
        %v356 = vld.sshfl [vmem:[#allocation1] sm:$0xff pattern:$0x75316420]
        %v357 = vld.sshfl [vmem:[#allocation1 + $0x8] sm:$0xff pattern:$0x75316420]
        %360 = vrot.lane.b32.xlu0 %v356, 127
        %v361 = vpop.permute.xlu0 %360
        %362 = vrot.lane.b32.xlu0 %v357, 127
        %v363 = vpop.permute.xlu0 %362
        %vm364 = vcmp.lt.s32.totalorder %v242, 127
        %v365 = vsel %vm364, %v361, %v363
        %v366 = vsel %vm364, %v363, %v361
        %s367 = scalar_lea.vmem [#allocation6], 5
        %v368 = vld [vmem:[%s367] ss:$8 sm:$0x3]
        %v370 = vperm.slane %v368, 0
        %v371 = vperm.slane %v368, 1
        %v374 = vmul.f32 %v365, %v370
        %v375 = vmul.f32 %v366, %v371
        %v378 = vrot.slane %v374, 4
        %v379 = vrot.slane %v375, 4
        %382 = vst [vmem:[#allocation2 + $0x20] sm:$0xf0] %v378
        %383 = vst [vmem:[#allocation2 + $0x28] sm:$0xf0] %v379
        %384 = vst [vmem:[#allocation1] ss:$2 sm:$0xff] %v230
        %v385 = vld.sshfl [vmem:[#allocation1] sm:$0xff pattern:$0x75316420]
        %v386 = vld.sshfl [vmem:[#allocation1 + $0x8] sm:$0xff pattern:$0x75316420]
        %389 = vrot.lane.b32.xlu0 %v385, 113
        %v390 = vpop.permute.xlu0 %389
        %391 = vrot.lane.b32.xlu0 %v386, 113
        %v392 = vpop.permute.xlu0 %391
        %vm393 = vcmp.lt.s32.totalorder %v242, 113
        %v394 = vsel %vm393, %v390, %v392
        %v395 = vsel %vm393, %v392, %v390
        %s396 = scalar_lea.vmem [#allocation6], 6
        %v397 = vld [vmem:[%s396] ss:$8 sm:$0x3]
        %v399 = vperm.slane %v397, 0
        %v400 = vperm.slane %v397, 1
        %v403 = vmul.f32 %v394, %v399
        %v404 = vmul.f32 %v395, %v400
        %405 = vst [vmem:[#allocation2 + $0x30] sm:$0xf] %v403
        %406 = vst [vmem:[#allocation2 + $0x38] sm:$0xf] %v404
        %407 = vst [vmem:[#allocation1] ss:$2 sm:$0xff] %v230
        %v408 = vld.sshfl [vmem:[#allocation1] sm:$0xff pattern:$0x75316420]
        %v409 = vld.sshfl [vmem:[#allocation1 + $0x8] sm:$0xff pattern:$0x75316420]
        %412 = vrot.lane.b32.xlu0 %v408, 112
        %v413 = vpop.permute.xlu0 %412
        %414 = vrot.lane.b32.xlu0 %v409, 112
        %v415 = vpop.permute.xlu0 %414
        %vm416 = vcmp.lt.s32.totalorder %v242, 112
        %v417 = vsel %vm416, %v413, %v415
        %v418 = vsel %vm416, %v415, %v413
        %s419 = scalar_lea.vmem [#allocation6], 7
        %v420 = vld [vmem:[%s419] ss:$8 sm:$0x3]
        %v422 = vperm.slane %v420, 0
        %v423 = vperm.slane %v420, 1
        %v426 = vmul.f32 %v417, %v422
        %v427 = vmul.f32 %v418, %v423
        %v430 = vrot.slane %v426, 4
        %v431 = vrot.slane %v427, 4
        %434 = vst [vmem:[#allocation2 + $0x30] sm:$0xf0] %v430
        %435 = vst [vmem:[#allocation2 + $0x38] sm:$0xf0] %v431
        %436 = vst [vmem:[#allocation1] ss:$2 sm:$0xff] %v230
        %v437 = vld.sshfl [vmem:[#allocation1] sm:$0xff pattern:$0x75316420]
        %v438 = vld.sshfl [vmem:[#allocation1 + $0x8] sm:$0xff pattern:$0x75316420]
        %441 = vrot.lane.b32.xlu0 %v437, 111
        %v442 = vpop.permute.xlu0 %441
        %443 = vrot.lane.b32.xlu0 %v438, 111
        %v444 = vpop.permute.xlu0 %443
        %vm445 = vcmp.lt.s32.totalorder %v242, 111
        %v446 = vsel %vm445, %v442, %v444
        %v447 = vsel %vm445, %v444, %v442
        %s448 = scalar_lea.vmem [#allocation6], 16
        %v449 = vld [vmem:[%s448] ss:$8 sm:$0x3]
        %v451 = vperm.slane %v449, 0
        %v452 = vperm.slane %v449, 1
        %v455 = vmul.f32 %v446, %v451
        %v456 = vmul.f32 %v447, %v452
        %457 = vst [vmem:[#allocation2 + $0x40] sm:$0xf] %v455
        %458 = vst [vmem:[#allocation2 + $0x48] sm:$0xf] %v456
        %v459 = vld [vmem:[#allocation3] sm:$0xff]
        %v460 = vld [vmem:[#allocation3 + $0x8] sm:$0xff]
        %v461 = vld [vmem:[#allocation2] sm:$0xff]
        %v462 = vld [vmem:[#allocation2 + $0x8] sm:$0xff]
        %v463 = vld [vmem:[#allocation2 + $0x10] sm:$0xff]
        %v464 = vld [vmem:[#allocation2 + $0x18] sm:$0xff]
        %v465 = vld [vmem:[#allocation2 + $0x20] sm:$0xff]
        %v466 = vld [vmem:[#allocation2 + $0x28] sm:$0xff]
        %v467 = vld [vmem:[#allocation2 + $0x30] sm:$0xff]
        %v468 = vld [vmem:[#allocation2 + $0x38] sm:$0xff]
        %v469 = vld [vmem:[#allocation2 + $0x40] sm:$0xf]
        %v470 = vld [vmem:[#allocation2 + $0x48] sm:$0xf]
        %v471 = vld [vmem:[%s2] sm:$0xff]
        %v472 = vld [vmem:[%s2 + $0x8] sm:$0xff]
        %474 = vset.pattern.permute.xlu0 0
        %475 = vperm.xlu0 %474, %v471
        %v476 = vpop.permute.xlu0 %475
        %479 = vset.pattern.permute.xlu0 0
        %480 = vperm.xlu0 %479, %v472
        %v481 = vpop.permute.xlu0 %480
        %vm483 = vcmask 293888
        %v485 = vsel %vm483, %v459, 0
        %v488 = vsel %vm483, %v460, 0
        %v491 = vsel %vm343, %v469, 0
        %v494 = vsel %vm343, %v470, 0
        %496 = vmatpush.msra.mxu0 0.0
        %497 = vmatpush.msra.mxu0 0.0
        %498 = vmatpush.msra.mxu0 0.0
        %499 = vmatpush.msra.mxu0 0.0
        %500 = vmatpush.msra.mxu0 0.0
        %501 = vmatpush.msra.mxu0 0.0
        %502 = vmatpush.msra.mxu0 0.0
        %503 = vmatpush.msra.mxu0 0.0
        %504 = vmatpush.msra.mxu0 0.0
        %505 = vmatpush.msra.mxu0 0.0
        %506 = vmatpush.msra.mxu0 0.0
        %507 = vmatpush.msra.mxu0 %v491
        %508 = vmatpush.msra.mxu0 %v467
        %509 = vmatpush.msra.mxu0 %v465
        %510 = vmatpush.msra.mxu0 %v463
        %511 = vmatpush.msra.mxu0 %v461
        %512 = vmatmul.f32.gmra.mxu0 %v485
        %v513 = vpop.f32.mrf.mxu0
        %v514 = vadd.f32 %v476, %v513
        %515 = vmatmul.f32.gmra.mxu0 %v488
        %v516 = vpop.f32.mrf.mxu0
        %v517 = vadd.f32 %v481, %v516
        %518 = vdwg.mxu0
        %519 = vmatpush.msra.mxu0 0.0
        %520 = vmatpush.msra.mxu0 0.0
        %521 = vmatpush.msra.mxu0 0.0
        %522 = vmatpush.msra.mxu0 0.0
        %523 = vmatpush.msra.mxu0 0.0
        %524 = vmatpush.msra.mxu0 0.0
        %525 = vmatpush.msra.mxu0 0.0
        %526 = vmatpush.msra.mxu0 0.0
        %527 = vmatpush.msra.mxu0 0.0
        %528 = vmatpush.msra.mxu0 0.0
        %529 = vmatpush.msra.mxu0 0.0
        %530 = vmatpush.msra.mxu0 %v494
        %531 = vmatpush.msra.mxu0 %v468
        %532 = vmatpush.msra.mxu0 %v466
        %533 = vmatpush.msra.mxu0 %v464
        %534 = vmatpush.msra.mxu0 %v462
        %535 = vmatmul.f32.gmra.mxu0 %v485
        %v536 = vpop.f32.mrf.mxu0
        %v537 = vadd.f32 %v476, %v536
        %538 = vmatmul.f32.gmra.mxu0 %v488
        %v539 = vpop.f32.mrf.mxu0
        %v540 = vadd.f32 %v481, %v539
        %541 = vdwg.mxu0
        %v542 = vxor.u32 %v514, 2147483648
        %v543 = vxor.u32 %v537, 2147483648
        %v544 = vxor.u32 %v517, 2147483648
        %v545 = vxor.u32 %v540, 2147483648
        %v546 = vmul.f32 %v542, 1.442695
        %v547 = vpow.pop %v546
        %v548 = vmul.f32 %v543, 1.442695
        %v549 = vpow.pop %v548
        %v550 = vmul.f32 %v544, 1.442695
        %v551 = vpow.pop %v550
        %v552 = vmul.f32 %v545, 1.442695
        %v553 = vpow.pop %v552
        %v554 = vadd.f32 %v547, 1.0
        %v555 = vadd.f32 %v549, 1.0
        %v556 = vadd.f32 %v551, 1.0
        %v557 = vadd.f32 %v553, 1.0
        %v558 = vrcp.pop %v554
        %v559 = vmul.f32 %v554, %v558
        %v560 = vsub.f32 1.0, %v559
        %v561 = vmul.f32 %v558, %v560
        %v562 = vadd.f32 %v558, %v561
        %vm563 = vweird.f32 %v554
        %vm564 = vweird.f32 %v558
        %vm565 = vmor %vm563, %vm564
        %v566 = vsel %vm565, %v558, %v562
        %v567 = vand.u32 2147483647, %v554
        %vm568 = vcmp.eq.f32.partialorder %v567, 8.507059e+37
        %v569 = vand.u32 %v554, 2147483648
        %v570 = vor.u32 1.1754944e-38, %v569
        %v571 = vsel %vm568, %v570, %v566
        %v572 = vmul.f32 1.0, %v571
        %v573 = vrcp.pop %v555
        %v574 = vmul.f32 %v555, %v573
        %v575 = vsub.f32 1.0, %v574
        %v576 = vmul.f32 %v573, %v575
        %v577 = vadd.f32 %v573, %v576
        %vm578 = vweird.f32 %v555
        %vm579 = vweird.f32 %v573
        %vm580 = vmor %vm578, %vm579
        %v581 = vsel %vm580, %v573, %v577
        %v582 = vand.u32 2147483647, %v555
        %vm583 = vcmp.eq.f32.partialorder %v582, 8.507059e+37
        %v584 = vand.u32 %v555, 2147483648
        %v585 = vor.u32 1.1754944e-38, %v584
        %v586 = vsel %vm583, %v585, %v581
        %v587 = vmul.f32 1.0, %v586
        %v588 = vrcp.pop %v556
        %v589 = vmul.f32 %v556, %v588
        %v590 = vsub.f32 1.0, %v589
        %v591 = vmul.f32 %v588, %v590
        %v592 = vadd.f32 %v588, %v591
        %vm593 = vweird.f32 %v556
        %vm594 = vweird.f32 %v588
        %vm595 = vmor %vm593, %vm594
        %v596 = vsel %vm595, %v588, %v592
        %v597 = vand.u32 2147483647, %v556
        %vm598 = vcmp.eq.f32.partialorder %v597, 8.507059e+37
        %v599 = vand.u32 %v556, 2147483648
        %v600 = vor.u32 1.1754944e-38, %v599
        %v601 = vsel %vm598, %v600, %v596
        %v602 = vmul.f32 1.0, %v601
        %v603 = vrcp.pop %v557
        %v604 = vmul.f32 %v557, %v603
        %v605 = vsub.f32 1.0, %v604
        %v606 = vmul.f32 %v603, %v605
        %v607 = vadd.f32 %v603, %v606
        %vm608 = vweird.f32 %v557
        %vm609 = vweird.f32 %v603
        %vm610 = vmor %vm608, %vm609
        %v611 = vsel %vm610, %v603, %v607
        %v612 = vand.u32 2147483647, %v557
        %vm613 = vcmp.eq.f32.partialorder %v612, 8.507059e+37
        %v614 = vand.u32 %v557, 2147483648
        %v615 = vor.u32 1.1754944e-38, %v614
        %v616 = vsel %vm613, %v615, %v611
        %v617 = vmul.f32 1.0, %v616
        %v618 = vmul.f32 %v514, %v572
        %v619 = vmul.f32 %v537, %v587
        %v620 = vmul.f32 %v517, %v602
        %v621 = vmul.f32 %v540, %v617
        %622 = vst [vmem:[%s224] sm:$0xff] %v618
        %623 = vst [vmem:[%s224 + $0x8] sm:$0xff] %v619
        %624 = vst [vmem:[%s224 + $0x10] sm:$0xff] %v620
        %625 = vst [vmem:[%s224 + $0x18] sm:$0xff] %v621
        %s626 = sand.u32 %s117, 1
        %s627 = scalar_lea.sflag [#allocation5], %s626
        %s628 = sand.u32 %s117, 1
        %s629 = smul.addr %s628, 32
        %s630 = scalar_lea.vmem [#allocation8], %s629
        // Predicated region
        $region45: #{tpu_custom_call.1} parent=35 // pred_check
          %p631 = pneg %p127
        $region46: #{tpu_custom_call.1} parent=35 // pred_check_branch
          %633 = sbr.rel (%p631) target = $region48
        $region47: #{tpu_custom_call.1} parent=35 // pred_region
          %635 = vsyncadd %s627, 0
          %s636 = smul.addr %s20, 4
          %s637 = smul.addr %s636, 8
          %s638 = scalar_lea.hbm %s4, %s637
          %s639 = sshll.u32 %s630, 4
          %s640 = int_to_ptr.vmem [resolvable:$true] %s639
          %s641 = sshll.u32 %s638, 4
          %s642 = int_to_ptr.hbm [resolvable:$true] %s641
          %647 = dma.vmem_to_hbm [thread:$0]  %s640, 512, %s642, %s627, 256, 256, 16
        $region48: #{tpu_custom_call.1} parent=35 // pred_fallthru
          _
      $region36: #{tpu_custom_call.1} parent=5 // pred_fallthru
        _
      %p648 = scmp.le.s32.totalorder 2, %s15
      // Predicated region
      $region49: #{tpu_custom_call.1} parent=5 // pred_check
        %p649 = pneg %p648
      $region50: #{tpu_custom_call.1} parent=5 // pred_check_branch
        %651 = sbr.rel (%p649) target = $region52
      $region51: #{tpu_custom_call.1} parent=5 // pred_region
        %s652 = ssub.s32 %s15, 2
        // Predicated region
        $region53: #{tpu_custom_call.1} parent=51 // pred_check
          %p653 = pneg %p133
        $region54: #{tpu_custom_call.1} parent=51 // pred_check_branch
          %655 = sbr.rel (%p653) target = $region56
        $region55: #{tpu_custom_call.1} parent=51 // pred_region
          %s656 = sand.u32 %s118, 1
          %s657 = scalar_lea.sflag [#allocation5], %s656
          %s658 = sand.u32 %s118, 1
          %s659 = smul.addr %s658, 32
          %s660 = scalar_lea.vmem [#allocation8], %s659
          %662 = dma.done %s657, 512
        $region56: #{tpu_custom_call.1} parent=51 // pred_fallthru
          _
      $region52: #{tpu_custom_call.1} parent=5 // pred_fallthru
        _
    $region6: #{tpu_custom_call.1} parent=1 // loop_footer
      %s19 = sadd.s32 1, %s15
    $region7: #{tpu_custom_call.1} parent=1 // loop_footer_branch
      %14 = sbr.rel target = $region3
    $region8: #{tpu_custom_call.1} parent=1 // loop_exit
      _
    %663 = vsyncpa [#allocation4], 1
    %s664 = scalar_lea.sflag [#allocation4], 1
    %665 = vsyncpa %s664, 1
    %666 = vsyncpa [#allocation7], 1
    %667 = vsyncpa [#allocation5], 1
    %s668 = scalar_lea.sflag [#allocation5], 1
    %669 = vsyncpa %s668, 1

</llo_original>
